<compile_context>
chip_gen: v7x
topology: tpu7x:2x2x1
jax: 0.10.0
libtpu: 0.0.40
codegen_flags: <defaults>
</compile_context>

<pallas_src>
import functools

import jax
import jax.numpy as jnp
from jax.experimental import pallas as pl
from jax.experimental.pallas import tpu as pltpu


LANE = 128


# ---------------------------------------------------------------------------
# Pallas kernels
# ---------------------------------------------------------------------------
def _mm_bias_relu_kernel(p_ref, w_ref, b_ref, o_ref):
    # p:(TM,K) bf16   w:(K,Np) bf16   b:(1,Np) f32   o:(TM,Np) o.dtype
    acc = jnp.dot(p_ref[...], w_ref[...], preferred_element_type=jnp.float32)
    o_ref[...] = jnp.maximum(acc + b_ref[...], 0.0).astype(o_ref.dtype)


def _mm_bias_add_relu_kernel(p_ref, w_ref, b_ref, add_ref, o_ref):
    # identity shortcut: residual streamed in bf16, accumulated in f32.
    acc = jnp.dot(p_ref[...], w_ref[...], preferred_element_type=jnp.float32)
    acc = acc + b_ref[...] + add_ref[...].astype(jnp.float32)
    o_ref[...] = jnp.maximum(acc, 0.0).astype(o_ref.dtype)


def _mm_bias_proj_relu_kernel(p_ref, w_ref, b_ref, xsc_ref, wsc_ref, o_ref):
    # projection shortcut fused as a second accumulating MXU dot
    # (no K-concatenation of the patch matrix in HBM).
    acc = jnp.dot(p_ref[...], w_ref[...], preferred_element_type=jnp.float32)
    acc = acc + jnp.dot(xsc_ref[...], wsc_ref[...],
                        preferred_element_type=jnp.float32)
    o_ref[...] = jnp.maximum(acc + b_ref[...], 0.0).astype(o_ref.dtype)


# ---------------------------------------------------------------------------
# pallas_call wrapper
# ---------------------------------------------------------------------------
def _compiler_params():
    kw = dict(dimension_semantics=("parallel",))
    try:
        cap = pltpu.get_tpu_info().vmem_capacity_bytes
        # ~25% headroom for Mosaic scratch + pipeline buffers; correct for both
        # 128 MiB (v5e/v6e) and 64 MiB (v7x) parts.
        kw["vmem_limit_bytes"] = int(min(cap * 3 // 4, 112 * 1024 * 1024))
    except Exception:
        pass  # fall back to the default scoped-VMEM limit
    return pltpu.CompilerParams(**kw)


def _tiled_matmul_call(p, w, bias, *, add=None, shortcut=None, out_dtype, tm):
    """relu(p @ w + bias [+ add | + x_sc @ w_sc]) tiled over rows of p."""
    Mp, K = p.shape
    _, Np = w.shape
    assert Mp % tm == 0
    grid = (Mp // tm,)

    in_specs = [
        pl.BlockSpec((tm, K), lambda i: (i, 0)),      # patch tile (pipelined)
        pl.BlockSpec((K, Np), lambda i: (0, 0)),      # folded weights (resident)
        pl.BlockSpec((1, Np), lambda i: (0, 0)),      # folded bias (resident)
    ]
    args = [p, w, bias]

    if shortcut is not None:
        x_sc, w_sc = shortcut
        kernel = _mm_bias_proj_relu_kernel
        Ksc = x_sc.shape[1]
        in_specs += [
            pl.BlockSpec((tm, Ksc), lambda i: (i, 0)),   # shortcut activations
            pl.BlockSpec((Ksc, Np), lambda i: (0, 0)),   # shortcut weights
        ]
        args += [x_sc, w_sc]
    elif add is not None:
        kernel = _mm_bias_add_relu_kernel
        in_specs.append(pl.BlockSpec((tm, Np), lambda i: (i, 0)))  # bf16 residual
        args.append(add)
    else:
        kernel = _mm_bias_relu_kernel

    flops = 2 * Mp * K * Np
    if shortcut is not None:
        flops += 2 * Mp * shortcut[0].shape[1] * Np
    out_bytes = Mp * Np * jnp.dtype(out_dtype).itemsize
    bytes_accessed = int(sum(a.size * a.dtype.itemsize for a in args) + out_bytes)

    return pl.pallas_call(
        kernel,
        out_shape=jax.ShapeDtypeStruct((Mp, Np), out_dtype),
        grid=grid,
        in_specs=in_specs,
        out_specs=pl.BlockSpec((tm, Np), lambda i: (i, 0)),
        compiler_params=_compiler_params(),
        cost_estimate=pl.CostEstimate(
            flops=flops, transcendentals=0, bytes_accessed=bytes_accessed),
    )(*args)


# ---------------------------------------------------------------------------
# Glue: im2col, conv+BN folding (plain JAX)
# ---------------------------------------------------------------------------
def _round_up(x, m):
    return (x + m - 1) // m * m


def _pad2d(a, rows, cols):
    return jnp.pad(a, ((0, rows - a.shape[0]), (0, cols - a.shape[1])))


def _pad_k(k):
    # Lane-align the contraction dim only if the zero-padding overhead on the
    # (DMA-bound) patch matrix stays <= ~15%; else just sublane-align for bf16.
    k128 = _round_up(k, LANE)
    return k128 if k128 <= k * 1.15 else _round_up(k, 16)


def _pick_tm(m):
    # Cap at 512 rows (worst-case ResNet tiles still fit VMEM with headroom),
    # but keep >= 4 grid steps so both v7x TensorCores get work under
    # dimension_semantics=("parallel",).
    return max(16, min(512, _round_up(pl.cdiv(m, 4), 16)))


def _im2col(x_nhwc, ksize, stride, pad):
    B, H, W, C = x_nhwc.shape
    xp = jnp.pad(x_nhwc, ((0, 0), (pad, pad), (pad, pad), (0, 0)))
    Ho = (H + 2 * pad - ksize) // stride + 1
    Wo = (W + 2 * pad - ksize) // stride + 1
    patches = []
    for i in range(ksize):
        for j in range(ksize):
            patches.append(xp[:, i:i + stride * Ho:stride, j:j + stride * Wo:stride, :])
    p = jnp.stack(patches, axis=3)                       # (B, Ho, Wo, k*k, C)
    return p.reshape(B * Ho * Wo, ksize * ksize * C), Ho, Wo


def _fold_conv_bn(w_oihw, bn, eps=1e-5):
    """Fold BN scale into the conv weight; return (w[K,Cout] f32, bias[1,Cout] f32)."""
    gamma, beta, mean, var = bn
    scale = gamma / jnp.sqrt(var + eps)                  # (Cout,)
    bias = beta - mean * scale                           # (Cout,)
    cout, cin, kh, kw = w_oihw.shape
    w = jnp.transpose(w_oihw, (2, 3, 1, 0)).reshape(kh * kw * cin, cout)
    w = w * scale[None, :]
    return w, bias.reshape(1, -1)


# ---------------------------------------------------------------------------
# ResidualBlock forward
# ---------------------------------------------------------------------------
def residual_block_forward(x_nchw, params, stride):
    """params: dict of conv weights (OIHW) and BN tuples (gamma, beta, mean, var)."""
    in_c = x_nchw.shape[1]
    out_c = params["w1"].shape[0]

    # NHWC, bf16 BEFORE im2col: the 9x-amplified patch matrices are built
    # (and padded) exactly once, already in bf16.
    x = jnp.transpose(x_nchw, (0, 2, 3, 1)).astype(jnp.bfloat16)
    B, H, W, _ = x.shape
    Np = _round_up(out_c, LANE)                                   # lane-dense Cout

    # --- conv1 + bn1 + relu --------------------------------------------------
    p1, Ho, Wo = _im2col(x, ksize=3, stride=stride, pad=1)        # bf16 (M, 9*Cin)
    M = B * Ho * Wo
    tm = _pick_tm(M)
    Mp = _round_up(M, tm)

    w1, b1 = _fold_conv_bn(params["w1"], params["bn1"])
    K1 = _pad_k(w1.shape[0])
    p1p = _pad2d(p1, Mp, K1)                                      # bf16, one pad op
    w1p = _pad2d(w1, K1, Np).astype(jnp.bfloat16)
    b1p = _pad2d(b1, 1, Np)

    # out1 emitted bf16: it is re-read ~9x by conv2's im2col below.
    out1p = _tiled_matmul_call(p1p, w1p, b1p, out_dtype=jnp.bfloat16, tm=tm)
    out1 = out1p[:M, :out_c].reshape(B, Ho, Wo, out_c)            # bf16 NHWC

    # --- conv2 + bn2 + shortcut + relu (fused) ---------------------------------
    p2, _, _ = _im2col(out1, ksize=3, stride=1, pad=1)            # bf16 (M, 9*Cout)
    w2, b2 = _fold_conv_bn(params["w2"], params["bn2"])
    K2 = _pad_k(w2.shape[0])
    p2p = _pad2d(p2, Mp, K2)
    w2p = _pad2d(w2, K2, Np).astype(jnp.bfloat16)

    add, shortcut = None, None
    if stride != 1 or in_c != out_c:
        # projection shortcut: second accumulating dot in-kernel (no K-concat
        # rewrite of the big patch matrix).
        x_sc = x[:, ::stride, ::stride, :].reshape(M, in_c)       # bf16
        w_sc, b_sc = _fold_conv_bn(params["w_sc"], params["bn_sc"])
        shortcut = (_pad2d(x_sc, Mp, in_c),
                    _pad2d(w_sc, in_c, Np).astype(jnp.bfloat16))
        b2 = b2 + b_sc
    else:
        # identity shortcut: bf16 residual streamed into the kernel.
        add = _pad2d(x.reshape(M, in_c), Mp, Np)                  # bf16 (Mp, Np)
    b2p = _pad2d(b2, 1, Np)

    out2p = _tiled_matmul_call(p2p, w2p, b2p, add=add, shortcut=shortcut,
                               out_dtype=jnp.float32, tm=tm)      # (Mp, Np) f32
    out = out2p[:M, :out_c].reshape(B, Ho, Wo, out_c)
    return jnp.transpose(out, (0, 3, 1, 2))                       # back to NCHW


# ---------------------------------------------------------------------------
# Plain-JAX reference (f32, for correctness check)
# ---------------------------------------------------------------------------
def _conv2d_ref(x_nhwc, w_oihw, stride, pad):
    w_hwio = jnp.transpose(w_oihw, (2, 3, 1, 0))
    return jax.lax.conv_general_dilated(
        x_nhwc, w_hwio, (stride, stride), [(pad, pad), (pad, pad)],
        dimension_numbers=("NHWC", "HWIO", "NHWC"))


def _bn_ref(x_nhwc, bn, eps=1e-5):
    gamma, beta, mean, var = bn
    return gamma * (x_nhwc - mean) / jnp.sqrt(var + eps) + beta


def residual_block_ref(x_nchw, params, stride):
    in_c = x_nchw.shape[1]
    out_c = params["w1"].shape[0]
    x = jnp.transpose(x_nchw, (0, 2, 3, 1)).astype(jnp.float32)
    out = jax.nn.relu(_bn_ref(_conv2d_ref(x, params["w1"], stride, 1), params["bn1"]))
    out = _bn_ref(_conv2d_ref(out, params["w2"], 1, 1), params["bn2"])
    if stride != 1 or in_c != out_c:
        sc = _bn_ref(_conv2d_ref(x, params["w_sc"], stride, 0), params["bn_sc"])
    else:
        sc = x
    out = jax.nn.relu(out + sc)
    return jnp.transpose(out, (0, 3, 1, 2))


# ---------------------------------------------------------------------------
def _make_params(key, cin, cout, with_proj):
    ks = jax.random.split(key, 12)
    params = {
        "w1": jax.random.normal(ks[0], (cout, cin, 3, 3), jnp.float32) * 0.1,
        "bn1": (jax.random.normal(ks[1], (cout,)) * 0.1 + 1.0,
                jax.random.normal(ks[2], (cout,)) * 0.1,
                jax.random.normal(ks[3], (cout,)) * 0.1,
                jnp.abs(jax.random.normal(ks[4], (cout,))) + 0.5),
        "w2": jax.random.normal(ks[5], (cout, cout, 3, 3), jnp.float32) * 0.1,
        "bn2": (jax.random.normal(ks[6], (cout,)) * 0.1 + 1.0,
                jax.random.normal(ks[7], (cout,)) * 0.1,
                jax.random.normal(ks[8], (cout,)) * 0.1,
                jnp.abs(jax.random.normal(ks[9], (cout,))) + 0.5),
    }
    if with_proj:
        params["w_sc"] = jax.random.normal(ks[10], (cout, cin, 1, 1), jnp.float32) * 0.1
        params["bn_sc"] = (jax.random.normal(ks[11], (cout,)) * 0.05 + 1.0,
                           jnp.zeros((cout,)), jnp.zeros((cout,)), jnp.ones((cout,)))
    return params


if __name__ == "__main__":
    key = jax.random.PRNGKey(0)
    k_a, k_b, k_xa, k_xb = jax.random.split(key, 4)

    # bf16 activations/weights with f32 MXU accumulation -> loose tolerance.
    ATOL, RTOL = 0.15, 0.1

    # Case A: projection shortcut (stride=2, Cin != Cout)
    B, Cin, Cout, H, W, stride = 2, 4, 8, 16, 16, 2
    params_a = _make_params(k_a, Cin, Cout, with_proj=True)
    x_a = jax.random.normal(k_xa, (B, Cin, H, W), jnp.float32)
    fwd_a = jax.jit(functools.partial(residual_block_forward, stride=stride))
    out_a = jax.block_until_ready(fwd_a(x_a, params_a))
    ref_a = residual_block_ref(x_a, params_a, stride)
    assert out_a.shape == (B, Cout, H // stride, W // stride), out_a.shape
    assert jnp.allclose(out_a, ref_a, atol=ATOL, rtol=RTOL), \
        float(jnp.max(jnp.abs(out_a - ref_a)))

    # Case B: identity shortcut (stride=1, Cin == Cout)
    C = 8
    params_b = _make_params(k_b, C, C, with_proj=False)
    x_b = jax.random.normal(k_xb, (B, C, H, W), jnp.float32)
    fwd_b = jax.jit(functools.partial(residual_block_forward, stride=1))
    out_b = jax.block_until_ready(fwd_b(x_b, params_b))
    ref_b = residual_block_ref(x_b, params_b, 1)
    assert out_b.shape == (B, C, H, W), out_b.shape
    assert jnp.allclose(out_b, ref_b, atol=ATOL, rtol=RTOL), \
        float(jnp.max(jnp.abs(out_b - ref_b)))

    print("KERNEL_OK")
</pallas_src>

<mosaic_0001>
module attributes {stable_mosaic.version = 11 : i64} {
  func.func @_mm_bias_relu_kernel(%arg0: i32, %arg1: memref<32x48xbf16, #tpu.memory_space<vmem>>, %arg2: memref<48x128xbf16, #tpu.memory_space<vmem>>, %arg3: memref<1x128xf32, #tpu.memory_space<vmem>>, %arg4: memref<32x128xbf16, #tpu.memory_space<vmem>>) attributes {dimension_semantics = [#tpu.dimension_semantics<parallel>], iteration_bounds = array<i64: 4>, scalar_prefetch = 0 : i64, scratch_operands = 0 : i64, tpu.core_type = #tpu.core_type<tc>, window_params = [{transform_indices = @transform_0, window_bounds = array<i64: 32, 48>}, {pipeline_mode = #tpu.pipeline_mode<synchronous>, transform_indices = @transform_1, window_bounds = array<i64: 48, 128>}, {pipeline_mode = #tpu.pipeline_mode<synchronous>, transform_indices = @transform_2, window_bounds = array<i64: 1, 128>}, {transform_indices = @transform_3, window_bounds = array<i64: 32, 128>}]} {
    %c0 = arith.constant 0 : index
    %c0_0 = arith.constant 0 : index
    %0 = vector.load %arg1[%c0, %c0_0] : memref<32x48xbf16, #tpu.memory_space<vmem>>, vector<32x48xbf16>
    %c0_1 = arith.constant 0 : index
    %c0_2 = arith.constant 0 : index
    %1 = vector.load %arg2[%c0_1, %c0_2] : memref<48x128xbf16, #tpu.memory_space<vmem>>, vector<48x128xbf16>
    %cst = arith.constant dense<0.000000e+00> : vector<32x128xf32>
    %2 = tpu.matmul %0, %1, %cst {dimension_numbers = #tpu.dot_dimension_numbers<[1], [0], [0], [1], [0, 0, 1, 1], [], []>} : vector<32x48xbf16>, vector<48x128xbf16>, vector<32x128xf32> -> vector<32x128xf32>
    %c0_3 = arith.constant 0 : index
    %c0_4 = arith.constant 0 : index
    %3 = vector.load %arg3[%c0_3, %c0_4] : memref<1x128xf32, #tpu.memory_space<vmem>>, vector<1x128xf32>
    %4 = vector.broadcast %3 : vector<1x128xf32> to vector<32x128xf32>
    %5 = arith.addf %2, %4 : vector<32x128xf32>
    %cst_5 = arith.constant 0.000000e+00 : f32
    %6 = vector.broadcast %cst_5 : f32 to vector<32x128xf32>
    %7 = arith.maximumf %5, %6 : vector<32x128xf32>
    %8 = arith.truncf %7 : vector<32x128xf32> to vector<32x128xbf16>
    %c0_6 = arith.constant 0 : index
    %c0_7 = arith.constant 0 : index
    %9 = vector.load %arg4[%c0_6, %c0_7] : memref<32x128xbf16, #tpu.memory_space<vmem>>, vector<32x128xbf16>
    tpu.vector_store %arg4[%c0_6, %c0_7], %8 {strides = array<i32>} : memref<32x128xbf16, #tpu.memory_space<vmem>>, vector<32x128xbf16>,
    return
  }
  func.func @transform_0(%arg0: i32) -> (i32, i32) {
    %c0_i32 = arith.constant 0 : i32
    %c0_i32_0 = arith.constant 0 : i32
    return %arg0, %c0_i32 : i32, i32
  }
  func.func @transform_1(%arg0: i32) -> (i32, i32) {
    %c0_i32 = arith.constant 0 : i32
    %c0_i32_0 = arith.constant 0 : i32
    %c0_i32_1 = arith.constant 0 : i32
    return %c0_i32, %c0_i32_0 : i32, i32
  }
  func.func @transform_2(%arg0: i32) -> (i32, i32) {
    %c0_i32 = arith.constant 0 : i32
    %c0_i32_0 = arith.constant 0 : i32
    %c0_i32_1 = arith.constant 0 : i32
    return %c0_i32, %c0_i32_0 : i32, i32
  }
  func.func @transform_3(%arg0: i32) -> (i32, i32) {
    %c0_i32 = arith.constant 0 : i32
    %c0_i32_0 = arith.constant 0 : i32
    return %arg0, %c0_i32 : i32, i32
  }
}

module attributes {stable_mosaic.version = 11 : i64} {
  func.func @_mm_bias_proj_relu_kernel(%arg0: i32, %arg1: memref<32x80xbf16, #tpu.memory_space<vmem>>, %arg2: memref<80x128xbf16, #tpu.memory_space<vmem>>, %arg3: memref<1x128xf32, #tpu.memory_space<vmem>>, %arg4: memref<32x4xbf16, #tpu.memory_space<vmem>>, %arg5: memref<4x128xbf16, #tpu.memory_space<vmem>>, %arg6: memref<32x128xf32, #tpu.memory_space<vmem>>) attributes {dimension_semantics = [#tpu.dimension_semantics<parallel>], iteration_bounds = array<i64: 4>, scalar_prefetch = 0 : i64, scratch_operands = 0 : i64, tpu.core_type = #tpu.core_type<tc>, window_params = [{transform_indices = @transform_0, window_bounds = array<i64: 32, 80>}, {pipeline_mode = #tpu.pipeline_mode<synchronous>, transform_indices = @transform_1, window_bounds = array<i64: 80, 128>}, {pipeline_mode = #tpu.pipeline_mode<synchronous>, transform_indices = @transform_2, window_bounds = array<i64: 1, 128>}, {transform_indices = @transform_3, window_bounds = array<i64: 32, 4>}, {pipeline_mode = #tpu.pipeline_mode<synchronous>, transform_indices = @transform_4, window_bounds = array<i64: 4, 128>}, {transform_indices = @transform_5, window_bounds = array<i64: 32, 128>}]} {
    %c0 = arith.constant 0 : index
    %c0_0 = arith.constant 0 : index
    %0 = vector.load %arg1[%c0, %c0_0] : memref<32x80xbf16, #tpu.memory_space<vmem>>, vector<32x80xbf16>
    %c0_1 = arith.constant 0 : index
    %c0_2 = arith.constant 0 : index
    %1 = vector.load %arg2[%c0_1, %c0_2] : memref<80x128xbf16, #tpu.memory_space<vmem>>, vector<80x128xbf16>
    %cst = arith.constant dense<0.000000e+00> : vector<32x128xf32>
    %2 = tpu.matmul %0, %1, %cst {dimension_numbers = #tpu.dot_dimension_numbers<[1], [0], [0], [1], [0, 0, 1, 1], [], []>} : vector<32x80xbf16>, vector<80x128xbf16>, vector<32x128xf32> -> vector<32x128xf32>
    %c0_3 = arith.constant 0 : index
    %c0_4 = arith.constant 0 : index
    %3 = vector.load %arg4[%c0_3, %c0_4] : memref<32x4xbf16, #tpu.memory_space<vmem>>, vector<32x4xbf16>
    %c0_5 = arith.constant 0 : index
    %c0_6 = arith.constant 0 : index
    %4 = vector.load %arg5[%c0_5, %c0_6] : memref<4x128xbf16, #tpu.memory_space<vmem>>, vector<4x128xbf16>
    %cst_7 = arith.constant dense<0.000000e+00> : vector<32x128xf32>
    %5 = tpu.matmul %3, %4, %cst_7 {dimension_numbers = #tpu.dot_dimension_numbers<[1], [0], [0], [1], [0, 0, 1, 1], [], []>} : vector<32x4xbf16>, vector<4x128xbf16>, vector<32x128xf32> -> vector<32x128xf32>
    %6 = arith.addf %2, %5 : vector<32x128xf32>
    %c0_8 = arith.constant 0 : index
    %c0_9 = arith.constant 0 : index
    %7 = vector.load %arg3[%c0_8, %c0_9] : memref<1x128xf32, #tpu.memory_space<vmem>>, vector<1x128xf32>
    %8 = vector.broadcast %7 : vector<1x128xf32> to vector<32x128xf32>
    %9 = arith.addf %6, %8 : vector<32x128xf32>
    %cst_10 = arith.constant 0.000000e+00 : f32
    %10 = vector.broadcast %cst_10 : f32 to vector<32x128xf32>
    %11 = arith.maximumf %9, %10 : vector<32x128xf32>
    %c0_11 = arith.constant 0 : index
    %c0_12 = arith.constant 0 : index
    %12 = vector.load %arg6[%c0_11, %c0_12] : memref<32x128xf32, #tpu.memory_space<vmem>>, vector<32x128xf32>
    tpu.vector_store %arg6[%c0_11, %c0_12], %11 {strides = array<i32>} : memref<32x128xf32, #tpu.memory_space<vmem>>, vector<32x128xf32>,
    return
  }
  func.func @transform_0(%arg0: i32) -> (i32, i32) {
    %c0_i32 = arith.constant 0 : i32
    %c0_i32_0 = arith.constant 0 : i32
    return %arg0, %c0_i32 : i32, i32
  }
  func.func @transform_1(%arg0: i32) -> (i32, i32) {
    %c0_i32 = arith.constant 0 : i32
    %c0_i32_0 = arith.constant 0 : i32
    %c0_i32_1 = arith.constant 0 : i32
    return %c0_i32, %c0_i32_0 : i32, i32
  }
  func.func @transform_2(%arg0: i32) -> (i32, i32) {
    %c0_i32 = arith.constant 0 : i32
    %c0_i32_0 = arith.constant 0 : i32
    %c0_i32_1 = arith.constant 0 : i32
    return %c0_i32, %c0_i32_0 : i32, i32
  }
  func.func @transform_3(%arg0: i32) -> (i32, i32) {
    %c0_i32 = arith.constant 0 : i32
    %c0_i32_0 = arith.constant 0 : i32
    return %arg0, %c0_i32 : i32, i32
  }
  func.func @transform_4(%arg0: i32) -> (i32, i32) {
    %c0_i32 = arith.constant 0 : i32
    %c0_i32_0 = arith.constant 0 : i32
    %c0_i32_1 = arith.constant 0 : i32
    return %c0_i32, %c0_i32_0 : i32, i32
  }
  func.func @transform_5(%arg0: i32) -> (i32, i32) {
    %c0_i32 = arith.constant 0 : i32
    %c0_i32_0 = arith.constant 0 : i32
    return %arg0, %c0_i32 : i32, i32
  }
}

</mosaic_0001>

<llo_original>
// kernel: residual_block_forward.2
$region0: #{residual_block_forward.2}
  #allocation0 [shape = 'u32[]', space=smem, size = 0x4, offset = 0x4, fixed_abs, tag = 'smem constant byte address 0x4 - core index']
  #allocation1 [shape = 'u32[144,128]{1,0:T(1,128)}', space=vmem, size = 0x12000, scoped, tag = 'internal scratch']
  %s0 = inlined_call_operand.vmem [shape: bf16[128,48], index: 0, kind: input, shape index: {}]
  %s1 = inlined_call_operand.vmem [shape: bf16[48,128], index: 1, kind: input, shape index: {}]
  %s2 = inlined_call_operand.vmem [shape: f32[1,128], index: 2, kind: input, shape index: {}]
  %s3 = inlined_call_operand.vmem [shape: bf16[128,128], index: 3, kind: output, shape index: {}]
  %s4 = sld [smem:[#allocation0]]
  $region45: #{residual_block_forward.2} parent=0
    _
  %s6 = ssub.s32 1, %s4
  %s7 = scalar_select 0, %s6, %s4
  loop: start=0, step=1, limit=6
  $region2: #{residual_block_forward.2} parent=0 // loop_pre_header
    _
  $region3: #{residual_block_forward.2} parent=0 // loop_header
    %s9 = sphi 0, %s13
    %p10 = scmp.ge.s32.totalorder %s9, 6
    %s19 = sphi 0, %s21
    %s22 = sphi 0, %s19
    %s23 = sphi 0, %s22
    %s39 = sphi 0, %s23
    %s43 = sphi 0, %s43
    %s45 = sphi 0, %s43
    %s46 = sphi 0, %s45
    %s60 = sphi 0, %s46
    %s64 = sphi 0, %s64
    %s66 = sphi 0, %s64
    %s67 = sphi 0, %s66
    %s81 = sphi 0, %s67
    %s87 = sphi 0, %s89
    %s90 = sphi 0, %s87
    %s91 = sphi 0, %s90
    %s107 = sphi 0, %s91
  $region4: #{residual_block_forward.2} parent=0 // loop_header_branch
    %12 = sbr.rel (%p10) target = $region8
  $region5: #{residual_block_forward.2} parent=0 // loop_body
    %s14 = ssub.s32 %s9, 1
    %s15 = ssub.s32 %s9, 2
    %s16 = sadd.s32 %s9, 1
    %s17 = ssub.s32 %s9, %s16
    %p18 = scmp.eq.s32.totalorder %s17, 0
    %s20 = sadd.s32 %s19, 1
    %s21 = scalar_select %p18, %s19, %s20
    %p24 = pneg %p18
    %p25 = scmp.eq.s32.totalorder %s9, 3
    %p26 = por %p24, %p25
    %p27 = scmp.ne.s32.totalorder %s19, %s22
    %p28 = scmp.eq.s32.totalorder %s9, 0
    %p29 = por %p27, %p28
    %p30 = scmp.ne.s32.totalorder %s19, %s22
    %p31 = scmp.eq.s32.totalorder %s14, 3
    %p32 = por %p30, %p31
    %p33 = scmp.ne.s32.totalorder %s22, %s23
    %p34 = scmp.eq.s32.totalorder %s14, 0
    %p35 = por %p33, %p34
    %p36 = scmp.ne.s32.totalorder %s22, %s23
    %p37 = scmp.eq.s32.totalorder %s15, 3
    %p38 = por %p36, %p37
    %p40 = scmp.ne.s32.totalorder %s23, %s39
    %p41 = scmp.eq.s32.totalorder %s15, 0
    %p42 = por %p40, %p41
    %s44 = sadd.s32 %s43, 1
    %p47 = scmp.eq.s32.totalorder %s9, 3
    %p48 = scmp.ne.s32.totalorder %s43, %s45
    %p49 = scmp.eq.s32.totalorder %s9, 0
    %p50 = por %p48, %p49
    %p51 = scmp.ne.s32.totalorder %s43, %s45
    %p52 = scmp.eq.s32.totalorder %s14, 3
    %p53 = por %p51, %p52
    %p54 = scmp.ne.s32.totalorder %s45, %s46
    %p55 = scmp.eq.s32.totalorder %s14, 0
    %p56 = por %p54, %p55
    %p57 = scmp.ne.s32.totalorder %s45, %s46
    %p58 = scmp.eq.s32.totalorder %s15, 3
    %p59 = por %p57, %p58
    %p61 = scmp.ne.s32.totalorder %s46, %s60
    %p62 = scmp.eq.s32.totalorder %s15, 0
    %p63 = por %p61, %p62
    %s65 = sadd.s32 %s64, 1
    %p68 = scmp.eq.s32.totalorder %s9, 3
    %p69 = scmp.ne.s32.totalorder %s64, %s66
    %p70 = scmp.eq.s32.totalorder %s9, 0
    %p71 = por %p69, %p70
    %p72 = scmp.ne.s32.totalorder %s64, %s66
    %p73 = scmp.eq.s32.totalorder %s14, 3
    %p74 = por %p72, %p73
    %p75 = scmp.ne.s32.totalorder %s66, %s67
    %p76 = scmp.eq.s32.totalorder %s14, 0
    %p77 = por %p75, %p76
    %p78 = scmp.ne.s32.totalorder %s66, %s67
    %p79 = scmp.eq.s32.totalorder %s15, 3
    %p80 = por %p78, %p79
    %p82 = scmp.ne.s32.totalorder %s67, %s81
    %p83 = scmp.eq.s32.totalorder %s15, 0
    %p84 = por %p82, %p83
    %s85 = ssub.s32 %s9, %s16
    %p86 = scmp.eq.s32.totalorder %s85, 0
    %s88 = sadd.s32 %s87, 1
    %s89 = scalar_select %p86, %s87, %s88
    %p92 = pneg %p86
    %p93 = scmp.eq.s32.totalorder %s9, 3
    %p94 = por %p92, %p93
    %p95 = scmp.ne.s32.totalorder %s87, %s90
    %p96 = scmp.eq.s32.totalorder %s9, 0
    %p97 = por %p95, %p96
    %p98 = scmp.ne.s32.totalorder %s87, %s90
    %p99 = scmp.eq.s32.totalorder %s14, 3
    %p100 = por %p98, %p99
    %p101 = scmp.ne.s32.totalorder %s90, %s91
    %p102 = scmp.eq.s32.totalorder %s14, 0
    %p103 = por %p101, %p102
    %p104 = scmp.ne.s32.totalorder %s90, %s91
    %p105 = scmp.eq.s32.totalorder %s15, 3
    %p106 = por %p104, %p105
    %p108 = scmp.ne.s32.totalorder %s91, %s107
    %p109 = scmp.eq.s32.totalorder %s15, 0
    %p110 = por %p108, %p109
    %p111 = scmp.le.s32.totalorder 1, %s9
    %p112 = scmp.lt.s32.totalorder %s9, 5
    %p113 = pnand %p111, %p112
    %p114 = pneg %p113
    // Predicated region
    $region9: #{residual_block_forward.2} parent=5 // pred_check
      _
    $region10: #{residual_block_forward.2} parent=5 // pred_check_branch
      %116 = sbr.rel (%p113) target = $region12
    $region11: #{residual_block_forward.2} parent=5 // pred_region
      %s117 = ssub.s32 %s9, 1
      // Predicated region
      $region13: #{residual_block_forward.2} parent=11 // pred_check
        %p118 = pneg %p56
      $region14: #{residual_block_forward.2} parent=11 // pred_check_branch
        %120 = sbr.rel (%p118) target = $region16
      $region15: #{residual_block_forward.2} parent=11 // pred_region
        _
      $region16: #{residual_block_forward.2} parent=11 // pred_fallthru
        _
      // Predicated region
      $region17: #{residual_block_forward.2} parent=11 // pred_check
        %p121 = pneg %p77
      $region18: #{residual_block_forward.2} parent=11 // pred_check_branch
        %123 = sbr.rel (%p121) target = $region20
      $region19: #{residual_block_forward.2} parent=11 // pred_region
        _
      $region20: #{residual_block_forward.2} parent=11 // pred_fallthru
        _
    $region12: #{residual_block_forward.2} parent=5 // pred_fallthru
      _
    %p124 = scmp.lt.s32.totalorder %s9, 4
    // Predicated region
    $region21: #{residual_block_forward.2} parent=5 // pred_check
      %p125 = pneg %p124
    $region22: #{residual_block_forward.2} parent=5 // pred_check_branch
      %127 = sbr.rel (%p125) target = $region24
    $region23: #{residual_block_forward.2} parent=5 // pred_region
      // Predicated region
      $region25: #{residual_block_forward.2} parent=23 // pred_check
        %p128 = pneg %p29
      $region26: #{residual_block_forward.2} parent=23 // pred_check_branch
        %130 = sbr.rel (%p128) target = $region28
      $region27: #{residual_block_forward.2} parent=23 // pred_region
        %s131 = smul.u32 4, %s9
        %p132 = scmp.lt.s32.totalorder %s131, 15
        %s133 = scalar_select %p132, %s131, 15
        %s134 = smul.addr %s133, 4
        %s135 = scalar_lea.vmem %s0, %s134
        %s136 = smul.u32 4, %s9
      $region28: #{residual_block_forward.2} parent=23 // pred_fallthru
        _
    $region24: #{residual_block_forward.2} parent=5 // pred_fallthru
      _
    %p137 = scmp.le.s32.totalorder 1, %s9
    %p138 = scmp.lt.s32.totalorder %s9, 5
    %p139 = pnand %p137, %p138
    %p140 = pneg %p139
    // Predicated region
    $region29: #{residual_block_forward.2} parent=5 // pred_check
      _
    $region30: #{residual_block_forward.2} parent=5 // pred_check_branch
      %142 = sbr.rel (%p139) target = $region32
    $region31: #{residual_block_forward.2} parent=5 // pred_region
      %s143 = ssub.s32 %s9, 1
      %s144 = smul.u32 4, %s14
      %p145 = scmp.lt.s32.totalorder %s144, 15
      %s146 = scalar_select %p145, %s144, 15
      %s147 = smul.addr %s146, 4
      %s148 = scalar_lea.vmem %s0, %s147
      %p149 = pneg %p35
      %p150 = pneg %p32
      %p151 = pneg %p56
      %p152 = pneg %p53
      %p153 = pneg %p77
      %p154 = pneg %p74
      %p155 = pneg %p103
      %p156 = pneg %p100
      %s157 = smul.u32 4, %s14
      %p158 = scmp.lt.s32.totalorder %s157, 15
      %s159 = scalar_select %p158, %s157, 15
      %s160 = smul.addr %s159, 4
      %s161 = scalar_lea.vmem %s3, %s160
      %s162 = smul.u32 4, %s14
      %p163 = scmp.lt.s32.totalorder %s162, 15
      %s164 = scalar_select %p163, %s162, 15
      %s165 = smul.addr %s164, 4
      %s166 = scalar_lea.vmem %s0, %s165
      %s167 = smul.u32 4, %s14
      %s168 = smul.u32 4, %s14
      %p169 = scmp.lt.s32.totalorder %s168, 15
      %s170 = scalar_select %p169, %s168, 15
      %s171 = smul.addr %s170, 4
      %s172 = scalar_lea.vmem %s3, %s171
      %s173 = smul.u32 4, %s14
      %v175 = vld [vmem:[%s166] sm:$0xf]
      %v176 = vld [vmem:[%s166 + $0x4] sm:$0xf]
      %v177 = vld [vmem:[%s166 + $0x8] sm:$0xf]
      %v178 = vld [vmem:[%s166 + $0xc] sm:$0xf]
      %v179 = vld [vmem:[%s1] sm:$0xf]
      %v180 = vld [vmem:[%s1 + $0x4] sm:$0xf]
      %v181 = vld [vmem:[%s1 + $0x8] sm:$0xf]
      %v182 = vld [vmem:[%s1 + $0xc] sm:$0xf]
      %v183 = vld [vmem:[%s1 + $0x10] sm:$0xf]
      %v184 = vld [vmem:[%s1 + $0x14] sm:$0xf]
      %v185 = vld [vmem:[%s2] sm:$0x1]
      %v187 = vlaneseq
      %v188 = vshrl.u32 %v187, 7
      %v189 = vsub.s32 0, %v188
      %v190 = vrot.slane %v185, %v189
      %v196 = vunpack.c.l.b16 %v175
      %v197 = vunpack.c.l.b16 %v176
      %v198 = vunpack.c.l.b16 %v177
      %v199 = vunpack.c.l.b16 %v178
      %v200 = vpack.c.b16 %v197, %v196
      %v201 = vpack.c.b16 %v199, %v198
      %v208 = vunpack.c.l.b16 %v179
      %v209 = vunpack.c.l.b16 %v180
      %v210 = vunpack.c.l.b16 %v181
      %v211 = vunpack.c.l.b16 %v182
      %v212 = vunpack.c.l.b16 %v183
      %v213 = vunpack.c.l.b16 %v184
      %v214 = vpack.c.b16 %v209, %v208
      %v215 = vpack.c.b16 %v211, %v210
      %v216 = vpack.c.b16 %v213, %v212
      %vm220 = vcmask 392192
      %v222 = vsel %vm220, %v200, 0
      %v225 = vsel %vm220, %v201, 0
      %227 = vmatprep.subr.bf16.mxu0 0
      %228 = vmatpush1.bf16.msra.mxu0 %v214
      %229 = vmatprep.subr.bf16.mxu0 0
      %230 = vmatpush1.bf16.msra.mxu0 %v215
      %231 = vmatprep.subr.bf16.mxu0 0
      %232 = vmatpush1.bf16.msra.mxu0 %v216
      %233 = vmatprep.subr.bf16.mxu0 0
      %234 = vmatpush1.bf16.msra.mxu0 0
      %235 = vmatprep.subr.bf16.mxu0 0
      %236 = vmatpush1.bf16.msra.mxu0 0
      %237 = vmatprep.subr.bf16.mxu0 0
      %238 = vmatpush1.bf16.msra.mxu0 0
      %239 = vmatprep.subr.bf16.mxu0 0
      %240 = vmatpush1.bf16.msra.mxu0 0
      %241 = vmatprep.subr.bf16.mxu0 0
      %242 = vmatpush1.bf16.msra.mxu0 0
      %243 = vmatprep.subr.bf16.mxu0 0
      %244 = vmatpush1.bf16.msra.mxu0 0
      %245 = vmatprep.subr.bf16.mxu0 0
      %246 = vmatpush1.bf16.msra.mxu0 0
      %247 = vmatprep.subr.bf16.mxu0 0
      %248 = vmatpush1.bf16.msra.mxu0 0
      %249 = vmatprep.subr.bf16.mxu0 0
      %250 = vmatpush1.bf16.msra.mxu0 0
      %251 = vmatprep.subr.bf16.mxu0 0
      %252 = vmatpush1.bf16.msra.mxu0 0
      %253 = vmatprep.subr.bf16.mxu0 0
      %254 = vmatpush1.bf16.msra.mxu0 0
      %255 = vmatprep.subr.bf16.mxu0 0
      %256 = vmatpush1.bf16.msra.mxu0 0
      %257 = vmatprep.subr.bf16.mxu0 0
      %258 = vmatpush1.bf16.msra.mxu0 0
      %259 = vmatprep.mubr.bf16.mxu0 0
      %260 = vmatmul.mubr.bf16.gmra.mrb[0].mxu0 %v222
      %v261 = vpop.f32.mrb[0].mxu0
      %v262 = vadd.f32 %v190, %v261
      %v263 = vpop.f32.mrb[0].mxu0
      %v264 = vpop.f32.mrb[0].mxu0
      %v265 = vadd.f32 %v190, %v264
      %v266 = vpop.f32.mrb[0].mxu0
      %267 = vmatprep.mubr.bf16.mxu0 0
      %268 = vmatmul.mubr.bf16.gmra.mrb[0].mxu0 %v225
      %v269 = vpop.f32.mrb[0].mxu0
      %v270 = vadd.f32 %v190, %v269
      %v271 = vpop.f32.mrb[0].mxu0
      %v272 = vpop.f32.mrb[0].mxu0
      %v273 = vadd.f32 %v190, %v272
      %v274 = vpop.f32.mrb[0].mxu0
      %275 = vdwg.mxu0
      %v276 = vmax.f32 %v262, 0.0
      %v277 = vmax.f32 %v265, 0.0
      %v278 = vmax.f32 %v270, 0.0
      %v279 = vmax.f32 %v273, 0.0
      %v280 = vpack.c.bf16 %v277, %v276
      %v281 = vpack.c.bf16 %v279, %v278
      %v284 = vunpack.c.l.b16 %v280
      %v285 = vunpack.c.h.b16 %v280
      %v286 = vunpack.c.l.b16 %v281
      %v287 = vunpack.c.h.b16 %v281
      %v288 = vpack.c.b16 %v284, %v284
      %v289 = vpack.c.b16 %v285, %v285
      %v290 = vpack.c.b16 %v286, %v286
      %v291 = vpack.c.b16 %v287, %v287
      %296 = vst [vmem:[%s172] sm:$0xf] %v288
      %297 = vst [vmem:[%s172 + $0x4] sm:$0xf] %v289
      %298 = vst [vmem:[%s172 + $0x8] sm:$0xf] %v290
      %299 = vst [vmem:[%s172 + $0xc] sm:$0xf] %v291
      %s300 = smul.u32 4, %s14
      %p301 = scmp.lt.s32.totalorder %s300, 15
      %s302 = scalar_select %p301, %s300, 15
      %s303 = smul.addr %s302, 4
      %s304 = scalar_lea.vmem %s3, %s303
      // Predicated region
      $region33: #{residual_block_forward.2} parent=31 // pred_check
        %p305 = pneg %p100
      $region34: #{residual_block_forward.2} parent=31 // pred_check_branch
        %307 = sbr.rel (%p305) target = $region36
      $region35: #{residual_block_forward.2} parent=31 // pred_region
        %s308 = smul.u32 4, %s14
      $region36: #{residual_block_forward.2} parent=31 // pred_fallthru
        _
    $region32: #{residual_block_forward.2} parent=5 // pred_fallthru
      _
    %p309 = scmp.le.s32.totalorder 2, %s9
    // Predicated region
    $region37: #{residual_block_forward.2} parent=5 // pred_check
      %p310 = pneg %p309
    $region38: #{residual_block_forward.2} parent=5 // pred_check_branch
      %312 = sbr.rel (%p310) target = $region40
    $region39: #{residual_block_forward.2} parent=5 // pred_region
      %s313 = ssub.s32 %s9, 2
      // Predicated region
      $region41: #{residual_block_forward.2} parent=39 // pred_check
        %p314 = pneg %p106
      $region42: #{residual_block_forward.2} parent=39 // pred_check_branch
        %316 = sbr.rel (%p314) target = $region44
      $region43: #{residual_block_forward.2} parent=39 // pred_region
        %s317 = smul.u32 4, %s15
        %p318 = scmp.lt.s32.totalorder %s317, 15
        %s319 = scalar_select %p318, %s317, 15
        %s320 = smul.addr %s319, 4
        %s321 = scalar_lea.vmem %s3, %s320
      $region44: #{residual_block_forward.2} parent=39 // pred_fallthru
        _
    $region40: #{residual_block_forward.2} parent=5 // pred_fallthru
      _
  $region6: #{residual_block_forward.2} parent=0 // loop_footer
    %s13 = sadd.s32 1, %s9
  $region7: #{residual_block_forward.2} parent=0 // loop_footer_branch
    %8 = sbr.rel target = $region3
  $region8: #{residual_block_forward.2} parent=0 // loop_exit
    _

// kernel: residual_block_forward.3
$region0: #{residual_block_forward.3}
  #allocation0 [shape = 'u32[]', space=smem, size = 0x4, offset = 0x4, fixed_abs, tag = 'smem constant byte address 0x4 - core index']
  #allocation1 [shape = 'u32[144,128]{1,0:T(1,128)}', space=vmem, size = 0x12000, scoped, tag = 'internal scratch']
  %s0 = inlined_call_operand.vmem [shape: bf16[128,80], index: 0, kind: input, shape index: {}]
  %s1 = inlined_call_operand.vmem [shape: bf16[80,128], index: 1, kind: input, shape index: {}]
  %s2 = inlined_call_operand.vmem [shape: f32[1,128], index: 2, kind: input, shape index: {}]
  %s3 = inlined_call_operand.vmem [shape: bf16[128,4], index: 3, kind: input, shape index: {}]
  %s4 = inlined_call_operand.vmem [shape: bf16[4,128], index: 4, kind: input, shape index: {}]
  %s5 = inlined_call_operand.vmem [shape: f32[128,128], index: 5, kind: output, shape index: {}]
  %s6 = sld [smem:[#allocation0]]
  $region53: #{residual_block_forward.3} parent=0
    _
  %s8 = ssub.s32 1, %s6
  %s9 = scalar_select 0, %s8, %s6
  loop: start=0, step=1, limit=6
  $region2: #{residual_block_forward.3} parent=0 // loop_pre_header
    _
  $region3: #{residual_block_forward.3} parent=0 // loop_header
    %s11 = sphi 0, %s15
    %p12 = scmp.ge.s32.totalorder %s11, 6
    %s21 = sphi 0, %s23
    %s24 = sphi 0, %s21
    %s25 = sphi 0, %s24
    %s41 = sphi 0, %s25
    %s45 = sphi 0, %s45
    %s47 = sphi 0, %s45
    %s48 = sphi 0, %s47
    %s62 = sphi 0, %s48
    %s66 = sphi 0, %s66
    %s68 = sphi 0, %s66
    %s69 = sphi 0, %s68
    %s83 = sphi 0, %s69
    %s89 = sphi 0, %s91
    %s92 = sphi 0, %s89
    %s93 = sphi 0, %s92
    %s109 = sphi 0, %s93
    %s113 = sphi 0, %s113
    %s115 = sphi 0, %s113
    %s116 = sphi 0, %s115
    %s130 = sphi 0, %s116
    %s136 = sphi 0, %s138
    %s139 = sphi 0, %s136
    %s140 = sphi 0, %s139
    %s156 = sphi 0, %s140
  $region4: #{residual_block_forward.3} parent=0 // loop_header_branch
    %14 = sbr.rel (%p12) target = $region8
  $region5: #{residual_block_forward.3} parent=0 // loop_body
    %s16 = ssub.s32 %s11, 1
    %s17 = ssub.s32 %s11, 2
    %s18 = sadd.s32 %s11, 1
    %s19 = ssub.s32 %s11, %s18
    %p20 = scmp.eq.s32.totalorder %s19, 0
    %s22 = sadd.s32 %s21, 1
    %s23 = scalar_select %p20, %s21, %s22
    %p26 = pneg %p20
    %p27 = scmp.eq.s32.totalorder %s11, 3
    %p28 = por %p26, %p27
    %p29 = scmp.ne.s32.totalorder %s21, %s24
    %p30 = scmp.eq.s32.totalorder %s11, 0
    %p31 = por %p29, %p30
    %p32 = scmp.ne.s32.totalorder %s21, %s24
    %p33 = scmp.eq.s32.totalorder %s16, 3
    %p34 = por %p32, %p33
    %p35 = scmp.ne.s32.totalorder %s24, %s25
    %p36 = scmp.eq.s32.totalorder %s16, 0
    %p37 = por %p35, %p36
    %p38 = scmp.ne.s32.totalorder %s24, %s25
    %p39 = scmp.eq.s32.totalorder %s17, 3
    %p40 = por %p38, %p39
    %p42 = scmp.ne.s32.totalorder %s25, %s41
    %p43 = scmp.eq.s32.totalorder %s17, 0
    %p44 = por %p42, %p43
    %s46 = sadd.s32 %s45, 1
    %p49 = scmp.eq.s32.totalorder %s11, 3
    %p50 = scmp.ne.s32.totalorder %s45, %s47
    %p51 = scmp.eq.s32.totalorder %s11, 0
    %p52 = por %p50, %p51
    %p53 = scmp.ne.s32.totalorder %s45, %s47
    %p54 = scmp.eq.s32.totalorder %s16, 3
    %p55 = por %p53, %p54
    %p56 = scmp.ne.s32.totalorder %s47, %s48
    %p57 = scmp.eq.s32.totalorder %s16, 0
    %p58 = por %p56, %p57
    %p59 = scmp.ne.s32.totalorder %s47, %s48
    %p60 = scmp.eq.s32.totalorder %s17, 3
    %p61 = por %p59, %p60
    %p63 = scmp.ne.s32.totalorder %s48, %s62
    %p64 = scmp.eq.s32.totalorder %s17, 0
    %p65 = por %p63, %p64
    %s67 = sadd.s32 %s66, 1
    %p70 = scmp.eq.s32.totalorder %s11, 3
    %p71 = scmp.ne.s32.totalorder %s66, %s68
    %p72 = scmp.eq.s32.totalorder %s11, 0
    %p73 = por %p71, %p72
    %p74 = scmp.ne.s32.totalorder %s66, %s68
    %p75 = scmp.eq.s32.totalorder %s16, 3
    %p76 = por %p74, %p75
    %p77 = scmp.ne.s32.totalorder %s68, %s69
    %p78 = scmp.eq.s32.totalorder %s16, 0
    %p79 = por %p77, %p78
    %p80 = scmp.ne.s32.totalorder %s68, %s69
    %p81 = scmp.eq.s32.totalorder %s17, 3
    %p82 = por %p80, %p81
    %p84 = scmp.ne.s32.totalorder %s69, %s83
    %p85 = scmp.eq.s32.totalorder %s17, 0
    %p86 = por %p84, %p85
    %s87 = ssub.s32 %s11, %s18
    %p88 = scmp.eq.s32.totalorder %s87, 0
    %s90 = sadd.s32 %s89, 1
    %s91 = scalar_select %p88, %s89, %s90
    %p94 = pneg %p88
    %p95 = scmp.eq.s32.totalorder %s11, 3
    %p96 = por %p94, %p95
    %p97 = scmp.ne.s32.totalorder %s89, %s92
    %p98 = scmp.eq.s32.totalorder %s11, 0
    %p99 = por %p97, %p98
    %p100 = scmp.ne.s32.totalorder %s89, %s92
    %p101 = scmp.eq.s32.totalorder %s16, 3
    %p102 = por %p100, %p101
    %p103 = scmp.ne.s32.totalorder %s92, %s93
    %p104 = scmp.eq.s32.totalorder %s16, 0
    %p105 = por %p103, %p104
    %p106 = scmp.ne.s32.totalorder %s92, %s93
    %p107 = scmp.eq.s32.totalorder %s17, 3
    %p108 = por %p106, %p107
    %p110 = scmp.ne.s32.totalorder %s93, %s109
    %p111 = scmp.eq.s32.totalorder %s17, 0
    %p112 = por %p110, %p111
    %s114 = sadd.s32 %s113, 1
    %p117 = scmp.eq.s32.totalorder %s11, 3
    %p118 = scmp.ne.s32.totalorder %s113, %s115
    %p119 = scmp.eq.s32.totalorder %s11, 0
    %p120 = por %p118, %p119
    %p121 = scmp.ne.s32.totalorder %s113, %s115
    %p122 = scmp.eq.s32.totalorder %s16, 3
    %p123 = por %p121, %p122
    %p124 = scmp.ne.s32.totalorder %s115, %s116
    %p125 = scmp.eq.s32.totalorder %s16, 0
    %p126 = por %p124, %p125
    %p127 = scmp.ne.s32.totalorder %s115, %s116
    %p128 = scmp.eq.s32.totalorder %s17, 3
    %p129 = por %p127, %p128
    %p131 = scmp.ne.s32.totalorder %s116, %s130
    %p132 = scmp.eq.s32.totalorder %s17, 0
    %p133 = por %p131, %p132
    %s134 = ssub.s32 %s11, %s18
    %p135 = scmp.eq.s32.totalorder %s134, 0
    %s137 = sadd.s32 %s136, 1
    %s138 = scalar_select %p135, %s136, %s137
    %p141 = pneg %p135
    %p142 = scmp.eq.s32.totalorder %s11, 3
    %p143 = por %p141, %p142
    %p144 = scmp.ne.s32.totalorder %s136, %s139
    %p145 = scmp.eq.s32.totalorder %s11, 0
    %p146 = por %p144, %p145
    %p147 = scmp.ne.s32.totalorder %s136, %s139
    %p148 = scmp.eq.s32.totalorder %s16, 3
    %p149 = por %p147, %p148
    %p150 = scmp.ne.s32.totalorder %s139, %s140
    %p151 = scmp.eq.s32.totalorder %s16, 0
    %p152 = por %p150, %p151
    %p153 = scmp.ne.s32.totalorder %s139, %s140
    %p154 = scmp.eq.s32.totalorder %s17, 3
    %p155 = por %p153, %p154
    %p157 = scmp.ne.s32.totalorder %s140, %s156
    %p158 = scmp.eq.s32.totalorder %s17, 0
    %p159 = por %p157, %p158
    %p160 = scmp.le.s32.totalorder 1, %s11
    %p161 = scmp.lt.s32.totalorder %s11, 5
    %p162 = pnand %p160, %p161
    %p163 = pneg %p162
    // Predicated region
    $region9: #{residual_block_forward.3} parent=5 // pred_check
      _
    $region10: #{residual_block_forward.3} parent=5 // pred_check_branch
      %165 = sbr.rel (%p162) target = $region12
    $region11: #{residual_block_forward.3} parent=5 // pred_region
      %s166 = ssub.s32 %s11, 1
      // Predicated region
      $region13: #{residual_block_forward.3} parent=11 // pred_check
        %p167 = pneg %p58
      $region14: #{residual_block_forward.3} parent=11 // pred_check_branch
        %169 = sbr.rel (%p167) target = $region16
      $region15: #{residual_block_forward.3} parent=11 // pred_region
        _
      $region16: #{residual_block_forward.3} parent=11 // pred_fallthru
        _
      // Predicated region
      $region17: #{residual_block_forward.3} parent=11 // pred_check
        %p170 = pneg %p79
      $region18: #{residual_block_forward.3} parent=11 // pred_check_branch
        %172 = sbr.rel (%p170) target = $region20
      $region19: #{residual_block_forward.3} parent=11 // pred_region
        _
      $region20: #{residual_block_forward.3} parent=11 // pred_fallthru
        _
      // Predicated region
      $region21: #{residual_block_forward.3} parent=11 // pred_check
        %p173 = pneg %p126
      $region22: #{residual_block_forward.3} parent=11 // pred_check_branch
        %175 = sbr.rel (%p173) target = $region24
      $region23: #{residual_block_forward.3} parent=11 // pred_region
        _
      $region24: #{residual_block_forward.3} parent=11 // pred_fallthru
        _
    $region12: #{residual_block_forward.3} parent=5 // pred_fallthru
      _
    %p176 = scmp.lt.s32.totalorder %s11, 4
    // Predicated region
    $region25: #{residual_block_forward.3} parent=5 // pred_check
      %p177 = pneg %p176
    $region26: #{residual_block_forward.3} parent=5 // pred_check_branch
      %179 = sbr.rel (%p177) target = $region28
    $region27: #{residual_block_forward.3} parent=5 // pred_region
      // Predicated region
      $region29: #{residual_block_forward.3} parent=27 // pred_check
        %p180 = pneg %p31
      $region30: #{residual_block_forward.3} parent=27 // pred_check_branch
        %182 = sbr.rel (%p180) target = $region32
      $region31: #{residual_block_forward.3} parent=27 // pred_region
        %s183 = smul.u32 4, %s11
        %p184 = scmp.lt.s32.totalorder %s183, 15
        %s185 = scalar_select %p184, %s183, 15
        %s186 = smul.addr %s185, 4
        %s187 = scalar_lea.vmem %s0, %s186
        %s188 = smul.u32 4, %s11
      $region32: #{residual_block_forward.3} parent=27 // pred_fallthru
        _
      // Predicated region
      $region33: #{residual_block_forward.3} parent=27 // pred_check
        %p189 = pneg %p99
      $region34: #{residual_block_forward.3} parent=27 // pred_check_branch
        %191 = sbr.rel (%p189) target = $region36
      $region35: #{residual_block_forward.3} parent=27 // pred_region
        %s192 = smul.u32 4, %s11
        %p193 = scmp.lt.s32.totalorder %s192, 15
        %s194 = scalar_select %p193, %s192, 15
        %s195 = smul.addr %s194, 4
        %s196 = scalar_lea.vmem %s3, %s195
        %s197 = smul.u32 4, %s11
      $region36: #{residual_block_forward.3} parent=27 // pred_fallthru
        _
    $region28: #{residual_block_forward.3} parent=5 // pred_fallthru
      _
    %p198 = scmp.le.s32.totalorder 1, %s11
    %p199 = scmp.lt.s32.totalorder %s11, 5
    %p200 = pnand %p198, %p199
    %p201 = pneg %p200
    // Predicated region
    $region37: #{residual_block_forward.3} parent=5 // pred_check
      _
    $region38: #{residual_block_forward.3} parent=5 // pred_check_branch
      %203 = sbr.rel (%p200) target = $region40
    $region39: #{residual_block_forward.3} parent=5 // pred_region
      %s204 = ssub.s32 %s11, 1
      %s205 = smul.u32 4, %s16
      %p206 = scmp.lt.s32.totalorder %s205, 15
      %s207 = scalar_select %p206, %s205, 15
      %s208 = smul.addr %s207, 4
      %s209 = scalar_lea.vmem %s0, %s208
      %p210 = pneg %p37
      %p211 = pneg %p34
      %p212 = pneg %p58
      %p213 = pneg %p55
      %p214 = pneg %p79
      %p215 = pneg %p76
      %s216 = smul.u32 4, %s16
      %p217 = scmp.lt.s32.totalorder %s216, 15
      %s218 = scalar_select %p217, %s216, 15
      %s219 = smul.addr %s218, 4
      %s220 = scalar_lea.vmem %s3, %s219
      %p221 = pneg %p105
      %p222 = pneg %p102
      %p223 = pneg %p126
      %p224 = pneg %p123
      %p225 = pneg %p152
      %p226 = pneg %p149
      %s227 = smul.u32 4, %s16
      %p228 = scmp.lt.s32.totalorder %s227, 15
      %s229 = scalar_select %p228, %s227, 15
      %s230 = smul.addr %s229, 8
      %s231 = scalar_lea.vmem %s5, %s230
      %s232 = smul.u32 4, %s16
      %p233 = scmp.lt.s32.totalorder %s232, 15
      %s234 = scalar_select %p233, %s232, 15
      %s235 = smul.addr %s234, 4
      %s236 = scalar_lea.vmem %s0, %s235
      %s237 = smul.u32 4, %s16
      %s238 = smul.u32 4, %s16
      %p239 = scmp.lt.s32.totalorder %s238, 15
      %s240 = scalar_select %p239, %s238, 15
      %s241 = smul.addr %s240, 4
      %s242 = scalar_lea.vmem %s3, %s241
      %s243 = smul.u32 4, %s16
      %s244 = smul.u32 4, %s16
      %p245 = scmp.lt.s32.totalorder %s244, 15
      %s246 = scalar_select %p245, %s244, 15
      %s247 = smul.addr %s246, 8
      %s248 = scalar_lea.vmem %s5, %s247
      %s249 = smul.u32 4, %s16
      %v251 = vld [vmem:[%s236] sm:$0xf]
      %v252 = vld [vmem:[%s236 + $0x4] sm:$0xf]
      %v253 = vld [vmem:[%s236 + $0x8] sm:$0xf]
      %v254 = vld [vmem:[%s236 + $0xc] sm:$0xf]
      %v255 = vld [vmem:[%s1] sm:$0xf]
      %v256 = vld [vmem:[%s1 + $0x4] sm:$0xf]
      %v257 = vld [vmem:[%s1 + $0x8] sm:$0xf]
      %v258 = vld [vmem:[%s1 + $0xc] sm:$0xf]
      %v259 = vld [vmem:[%s1 + $0x10] sm:$0xf]
      %v260 = vld [vmem:[%s1 + $0x14] sm:$0xf]
      %v261 = vld [vmem:[%s1 + $0x18] sm:$0xf]
      %v262 = vld [vmem:[%s1 + $0x1c] sm:$0xf]
      %v263 = vld [vmem:[%s1 + $0x20] sm:$0xf]
      %v264 = vld [vmem:[%s1 + $0x24] sm:$0xf]
      %v265 = vld [vmem:[%s242] sm:$0xf]
      %v266 = vld [vmem:[%s242 + $0x4] sm:$0xf]
      %v267 = vld [vmem:[%s242 + $0x8] sm:$0xf]
      %v268 = vld [vmem:[%s242 + $0xc] sm:$0xf]
      %v269 = vld [vmem:[%s4] sm:$0x3]
      %v274 = vunpack.c.l.b16 %v265
      %v275 = vunpack.c.l.b16 %v266
      %v276 = vunpack.c.l.b16 %v267
      %v277 = vunpack.c.l.b16 %v268
      %v278 = vpack.c.b16 %v275, %v274
      %v279 = vpack.c.b16 %v277, %v276
      %vm280 = vcmask 31744
      %v282 = vsel %vm280, %v278, 0
      %v285 = vsel %vm280, %v279, 0
      %vm287 = vcmask 1041408
      %v289 = vsel %vm287, %v269, 0
      %291 = vmatprep.subr.bf16.mxu0 0
      %292 = vmatpush1.bf16.msra.mxu0 %v289
      %293 = vmatprep.subr.bf16.mxu0 0
      %294 = vmatpush1.bf16.msra.mxu0 0
      %295 = vmatprep.subr.bf16.mxu0 0
      %296 = vmatpush1.bf16.msra.mxu0 0
      %297 = vmatprep.subr.bf16.mxu0 0
      %298 = vmatpush1.bf16.msra.mxu0 0
      %299 = vmatprep.subr.bf16.mxu0 0
      %300 = vmatpush1.bf16.msra.mxu0 0
      %301 = vmatprep.subr.bf16.mxu0 0
      %302 = vmatpush1.bf16.msra.mxu0 0
      %303 = vmatprep.subr.bf16.mxu0 0
      %304 = vmatpush1.bf16.msra.mxu0 0
      %305 = vmatprep.subr.bf16.mxu0 0
      %306 = vmatpush1.bf16.msra.mxu0 0
      %307 = vmatprep.subr.bf16.mxu0 0
      %308 = vmatpush1.bf16.msra.mxu0 0
      %309 = vmatprep.subr.bf16.mxu0 0
      %310 = vmatpush1.bf16.msra.mxu0 0
      %311 = vmatprep.subr.bf16.mxu0 0
      %312 = vmatpush1.bf16.msra.mxu0 0
      %313 = vmatprep.subr.bf16.mxu0 0
      %314 = vmatpush1.bf16.msra.mxu0 0
      %315 = vmatprep.subr.bf16.mxu0 0
      %316 = vmatpush1.bf16.msra.mxu0 0
      %317 = vmatprep.subr.bf16.mxu0 0
      %318 = vmatpush1.bf16.msra.mxu0 0
      %319 = vmatprep.subr.bf16.mxu0 0
      %320 = vmatpush1.bf16.msra.mxu0 0
      %321 = vmatprep.subr.bf16.mxu0 0
      %322 = vmatpush1.bf16.msra.mxu0 0
      %323 = vmatprep.mubr.bf16.mxu0 0
      %324 = vmatmul.mubr.bf16.gmra.mrb[0].mxu0 %v282
      %v325 = vpop.f32.mrb[0].mxu0
      %v326 = vadd.f32 0.0, %v325
      %v327 = vpop.f32.mrb[0].mxu0
      %v328 = vpop.f32.mrb[0].mxu0
      %v329 = vadd.f32 0.0, %v328
      %v330 = vpop.f32.mrb[0].mxu0
      %331 = vmatprep.mubr.bf16.mxu0 0
      %332 = vmatmul.mubr.bf16.gmra.mrb[0].mxu0 %v285
      %v333 = vpop.f32.mrb[0].mxu0
      %v334 = vadd.f32 0.0, %v333
      %v335 = vpop.f32.mrb[0].mxu0
      %v336 = vpop.f32.mrb[0].mxu0
      %v337 = vadd.f32 0.0, %v336
      %v338 = vpop.f32.mrb[0].mxu0
      %339 = vdwg.mxu0
      %v344 = vunpack.c.l.b16 %v251
      %v345 = vunpack.c.l.b16 %v252
      %v346 = vunpack.c.l.b16 %v253
      %v347 = vunpack.c.l.b16 %v254
      %v348 = vpack.c.b16 %v345, %v344
      %v349 = vpack.c.b16 %v347, %v346
      %v360 = vunpack.c.l.b16 %v255
      %v361 = vunpack.c.l.b16 %v256
      %v362 = vunpack.c.l.b16 %v257
      %v363 = vunpack.c.l.b16 %v258
      %v364 = vunpack.c.l.b16 %v259
      %v365 = vunpack.c.l.b16 %v260
      %v366 = vunpack.c.l.b16 %v261
      %v367 = vunpack.c.l.b16 %v262
      %v368 = vunpack.c.l.b16 %v263
      %v369 = vunpack.c.l.b16 %v264
      %v370 = vpack.c.b16 %v361, %v360
      %v371 = vpack.c.b16 %v363, %v362
      %v372 = vpack.c.b16 %v365, %v364
      %v373 = vpack.c.b16 %v367, %v366
      %v374 = vpack.c.b16 %v369, %v368
      %vm380 = vcmask 654336
      %v382 = vsel %vm380, %v348, 0
      %v385 = vsel %vm380, %v349, 0
      %387 = vmatprep.subr.bf16.mxu0 0
      %388 = vmatpush1.bf16.msra.mxu0 %v370
      %389 = vmatprep.subr.bf16.mxu0 0
      %390 = vmatpush1.bf16.msra.mxu0 %v371
      %391 = vmatprep.subr.bf16.mxu0 0
      %392 = vmatpush1.bf16.msra.mxu0 %v372
      %393 = vmatprep.subr.bf16.mxu0 0
      %394 = vmatpush1.bf16.msra.mxu0 %v373
      %395 = vmatprep.subr.bf16.mxu0 0
      %396 = vmatpush1.bf16.msra.mxu0 %v374
      %397 = vmatprep.subr.bf16.mxu0 0
      %398 = vmatpush1.bf16.msra.mxu0 0
      %399 = vmatprep.subr.bf16.mxu0 0
      %400 = vmatpush1.bf16.msra.mxu0 0
      %401 = vmatprep.subr.bf16.mxu0 0
      %402 = vmatpush1.bf16.msra.mxu0 0
      %403 = vmatprep.subr.bf16.mxu0 0
      %404 = vmatpush1.bf16.msra.mxu0 0
      %405 = vmatprep.subr.bf16.mxu0 0
      %406 = vmatpush1.bf16.msra.mxu0 0
      %407 = vmatprep.subr.bf16.mxu0 0
      %408 = vmatpush1.bf16.msra.mxu0 0
      %409 = vmatprep.subr.bf16.mxu0 0
      %410 = vmatpush1.bf16.msra.mxu0 0
      %411 = vmatprep.subr.bf16.mxu0 0
      %412 = vmatpush1.bf16.msra.mxu0 0
      %413 = vmatprep.subr.bf16.mxu0 0
      %414 = vmatpush1.bf16.msra.mxu0 0
      %415 = vmatprep.subr.bf16.mxu0 0
      %416 = vmatpush1.bf16.msra.mxu0 0
      %417 = vmatprep.subr.bf16.mxu0 0
      %418 = vmatpush1.bf16.msra.mxu0 0
      %419 = vmatprep.mubr.bf16.mxu0 0
      %420 = vmatmul.mubr.bf16.gmra.mrb[0].mxu0 %v382
      %v421 = vpop.f32.mrb[0].mxu0
      %v422 = vadd.f32 %v326, %v421
      %v423 = vpop.f32.mrb[0].mxu0
      %v424 = vpop.f32.mrb[0].mxu0
      %v425 = vadd.f32 %v329, %v424
      %v426 = vpop.f32.mrb[0].mxu0
      %427 = vmatprep.mubr.bf16.mxu0 0
      %428 = vmatmul.mubr.bf16.gmra.mrb[0].mxu0 %v385
      %v429 = vpop.f32.mrb[0].mxu0
      %v430 = vadd.f32 %v334, %v429
      %v431 = vpop.f32.mrb[0].mxu0
      %v432 = vpop.f32.mrb[0].mxu0
      %v433 = vadd.f32 %v337, %v432
      %v434 = vpop.f32.mrb[0].mxu0
      %435 = vdwg.mxu0
      %v436 = vld [vmem:[%s2] sm:$0x1]
      %v438 = vlaneseq
      %v439 = vshrl.u32 %v438, 7
      %v440 = vsub.s32 0, %v439
      %v441 = vrot.slane %v436, %v440
      %v443 = vadd.f32 %v422, %v441
      %v444 = vadd.f32 %v425, %v441
      %v445 = vadd.f32 %v430, %v441
      %v446 = vadd.f32 %v433, %v441
      %v447 = vmax.f32 %v443, 0.0
      %v448 = vmax.f32 %v444, 0.0
      %v449 = vmax.f32 %v445, 0.0
      %v450 = vmax.f32 %v446, 0.0
      %451 = vst [vmem:[%s248] sm:$0xff] %v447
      %452 = vst [vmem:[%s248 + $0x8] sm:$0xff] %v448
      %453 = vst [vmem:[%s248 + $0x10] sm:$0xff] %v449
      %454 = vst [vmem:[%s248 + $0x18] sm:$0xff] %v450
      %s455 = smul.u32 4, %s16
      %p456 = scmp.lt.s32.totalorder %s455, 15
      %s457 = scalar_select %p456, %s455, 15
      %s458 = smul.addr %s457, 8
      %s459 = scalar_lea.vmem %s5, %s458
      // Predicated region
      $region41: #{residual_block_forward.3} parent=39 // pred_check
        %p460 = pneg %p149
      $region42: #{residual_block_forward.3} parent=39 // pred_check_branch
        %462 = sbr.rel (%p460) target = $region44
      $region43: #{residual_block_forward.3} parent=39 // pred_region
        %s463 = smul.u32 4, %s16
      $region44: #{residual_block_forward.3} parent=39 // pred_fallthru
        _
    $region40: #{residual_block_forward.3} parent=5 // pred_fallthru
      _
    %p464 = scmp.le.s32.totalorder 2, %s11
    // Predicated region
    $region45: #{residual_block_forward.3} parent=5 // pred_check
      %p465 = pneg %p464
    $region46: #{residual_block_forward.3} parent=5 // pred_check_branch
      %467 = sbr.rel (%p465) target = $region48
    $region47: #{residual_block_forward.3} parent=5 // pred_region
      %s468 = ssub.s32 %s11, 2
      // Predicated region
      $region49: #{residual_block_forward.3} parent=47 // pred_check
        %p469 = pneg %p155
      $region50: #{residual_block_forward.3} parent=47 // pred_check_branch
        %471 = sbr.rel (%p469) target = $region52
      $region51: #{residual_block_forward.3} parent=47 // pred_region
        %s472 = smul.u32 4, %s17
        %p473 = scmp.lt.s32.totalorder %s472, 15
        %s474 = scalar_select %p473, %s472, 15
        %s475 = smul.addr %s474, 8
        %s476 = scalar_lea.vmem %s5, %s475
      $region52: #{residual_block_forward.3} parent=47 // pred_fallthru
        _
    $region48: #{residual_block_forward.3} parent=5 // pred_fallthru
      _
  $region6: #{residual_block_forward.3} parent=0 // loop_footer
    %s15 = sadd.s32 1, %s11
  $region7: #{residual_block_forward.3} parent=0 // loop_footer_branch
    %10 = sbr.rel target = $region3
  $region8: #{residual_block_forward.3} parent=0 // loop_exit
    _

</llo_original>
